<compile_context>
chip_gen: v7x
topology: tpu7x:2x2x1
jax: 0.10.0
libtpu: 0.0.40
codegen_flags: <defaults>
</compile_context>

<pallas_src>
import functools

import jax
import jax.numpy as jnp
from jax import lax
from jax.experimental import pallas as pl
from jax.experimental.pallas import tpu as pltpu

_LANE = 128
_MAX_REDUCE_ROWS_F32 = 8192   # 4 MiB per f32 input block (sum/mean path: 2 inputs)
_MAX_ELEM_ROWS_F32 = 4096     # 2 MiB per f32 array block ('none' path: 3 arrays)
_VMEM_LIMIT_BYTES = 48 * 1024 * 1024  # covers v5e 16 MiB default; < v7x 64 MiB phys


def _round_up(x: int, m: int) -> int:
    return ((x + m - 1) // m) * m


def _huber_elem(d, beta):
    """Elementwise smooth-L1 in f32 (matches F.smooth_l1_loss semantics)."""
    ad = jnp.abs(d)
    if beta == 0.0:
        return ad
    half_inv_beta = 0.5 / beta  # multiply instead of per-element divide
    return jnp.where(ad < beta, d * d * half_inv_beta, ad - 0.5 * beta)


def _partial_sum_kernel(p_ref, t_ref, out_ref, *, beta, block_rows, valid_rows,
                        mask_tail):
    d = p_ref[...].astype(jnp.float32) - t_ref[...].astype(jnp.float32)
    loss = _huber_elem(d, beta)
    if mask_tail:
        # Partial last block: rows beyond `valid_rows` hold unspecified VMEM.
        row = (lax.broadcasted_iota(jnp.int32, (block_rows, _LANE), 0)
               + pl.program_id(0) * block_rows)
        loss = jnp.where(row < valid_rows, loss, 0.0)
    groups = block_rows // 8
    if groups > 8 and groups % 8 == 0:
        # 8 independent (8,128) accumulators -> parallel VALU adds, then a
        # short 8-deep chain.  Avoids a single serial dependence chain.
        part = jnp.sum(loss.reshape(groups // 8, 8, 8, _LANE), axis=0)
        out_ref[...] = jnp.sum(part, axis=0)
    else:
        out_ref[...] = jnp.sum(loss.reshape(groups, 8, _LANE), axis=0)


def _elem_kernel(p_ref, t_ref, o_ref, *, beta):
    d = p_ref[...].astype(jnp.float32) - t_ref[...].astype(jnp.float32)
    o_ref[...] = _huber_elem(d, beta).astype(o_ref.dtype)


def _prepare(pred, target, align):
    """(rows,128) views in the ORIGINAL dtype; pad only lane-tail / tiny inputs.

    Zero padding is safe: pred_pad == target_pad == 0 => zero loss.
    """
    n = pred.size
    rows = pl.cdiv(n, _LANE)
    rows_total = max(rows, align)       # tiny input: round up to one aligned tile
    n_total = rows_total * _LANE
    p = pred.reshape(-1)
    t = target.reshape(-1)
    if n_total != n:
        p = jnp.pad(p, (0, n_total - n))
        t = jnp.pad(t, (0, n_total - n))
    return p.reshape(rows_total, _LANE), t.reshape(rows_total, _LANE), rows_total


def _pick_block_rows(rows_total, align, max_rows):
    max_rows = max(align, (max_rows // align) * align)
    # Largest aligned block that does not exceed the array; partial last block
    # (handled by Pallas + in-kernel masking) covers any remainder.
    return min(max_rows, (rows_total // align) * align)


def huber_loss(pred, target, beta: float = 1.0, reduction: str = "mean"):
    assert pred.shape == target.shape, "pred/target shape mismatch"
    if reduction not in ("mean", "sum", "none"):
        raise ValueError(f"unknown reduction: {reduction}")

    orig_shape = pred.shape
    orig_dtype = pred.dtype
    n = pred.size
    itemsize = jnp.dtype(orig_dtype).itemsize
    scale = max(1, 4 // itemsize)        # bf16 moves the same bytes/step as f32
    align = 8 * scale                    # sublane tile: 8 (f32), 16 (bf16), ...

    if reduction == "none":
        max_rows = _MAX_ELEM_ROWS_F32 * scale
    else:
        max_rows = _MAX_REDUCE_ROWS_F32 * scale

    p2d, t2d, rows_total = _prepare(pred, target, align)
    block_rows = _pick_block_rows(rows_total, align, max_rows)
    num_blocks = pl.cdiv(rows_total, block_rows)
    mask_tail = (rows_total % block_rows) != 0
    padded = (rows_total * _LANE) != n

    grid = (num_blocks,)
    in_specs = [
        pl.BlockSpec((block_rows, _LANE), lambda i: (i, 0)),
        pl.BlockSpec((block_rows, _LANE), lambda i: (i, 0)),
    ]
    compiler_params = pltpu.CompilerParams(
        dimension_semantics=("parallel",),
        vmem_limit_bytes=_VMEM_LIMIT_BYTES,
    )

    if reduction in ("mean", "sum"):
        kernel = functools.partial(
            _partial_sum_kernel, beta=beta, block_rows=block_rows,
            valid_rows=rows_total, mask_tail=mask_tail)
        partials = pl.pallas_call(
            kernel,
            out_shape=jax.ShapeDtypeStruct((num_blocks * 8, _LANE), jnp.float32),
            grid_spec=pltpu.PrefetchScalarGridSpec(
                num_scalar_prefetch=0,
                grid=grid,
                in_specs=in_specs,
                out_specs=pl.BlockSpec((8, _LANE), lambda i: (i, 0)),
            ),
            compiler_params=compiler_params,
            cost_estimate=pl.CostEstimate(
                flops=6 * n,
                transcendentals=0,
                bytes_accessed=2 * n * itemsize + num_blocks * 8 * _LANE * 4,
            ),
        )(p2d, t2d)
        total = jnp.sum(partials)               # tiny final reduction in JAX
        if reduction == "mean":
            total = total / jnp.float32(n)
        return total.astype(orig_dtype)

    # reduction == "none"
    kernel = functools.partial(_elem_kernel, beta=beta)
    out = pl.pallas_call(
        kernel,
        out_shape=jax.ShapeDtypeStruct((rows_total, _LANE), orig_dtype),
        grid_spec=pltpu.PrefetchScalarGridSpec(
            num_scalar_prefetch=0,
            grid=grid,
            in_specs=in_specs,
            out_specs=pl.BlockSpec((block_rows, _LANE), lambda i: (i, 0)),
        ),
        compiler_params=compiler_params,
        cost_estimate=pl.CostEstimate(
            flops=5 * n, transcendentals=0, bytes_accessed=3 * n * itemsize),
    )(p2d, t2d)
    if padded:
        return out.reshape(-1)[:n].reshape(orig_shape)
    return out.reshape(orig_shape)


class HuberLossPallas:
    """JAX/Pallas equivalent of the PyTorch HuberLoss module (F.smooth_l1_loss)."""

    def __init__(self, beta: float = 1.0, reduction: str = "mean"):
        self.beta = beta
        self.reduction = reduction

    def __call__(self, pred, target, threshold=None):
        # `threshold` is unused; kept for API compatibility with the module.
        return huber_loss(pred, target, beta=self.beta, reduction=self.reduction)


def _ref_huber(pred, target, beta=1.0, reduction="mean"):
    d = pred.astype(jnp.float32) - target.astype(jnp.float32)
    ad = jnp.abs(d)
    if beta == 0.0:
        loss = ad
    else:
        loss = jnp.where(ad < beta, 0.5 * d * d / beta, ad - 0.5 * beta)
    if reduction == "mean":
        return jnp.mean(loss)
    if reduction == "sum":
        return jnp.sum(loss)
    return loss


if __name__ == "__main__":
    key = jax.random.PRNGKey(0)
    k1, k2, k3, k4, k5, k6 = jax.random.split(key, 6)

    # Shape implied by the module docstring: [batch, channels, height, width].
    B, C, H, W = 2, 4, 16, 16
    pred = jax.random.normal(k1, (B, C, H, W), dtype=jnp.float32)
    target = jax.random.normal(k2, (B, C, H, W), dtype=jnp.float32)

    loss_mod = HuberLossPallas(beta=1.0, reduction="mean")
    out = jax.block_until_ready(loss_mod(pred, target))
    ref = _ref_huber(pred, target, 1.0, "mean")
    assert jnp.allclose(out, ref, rtol=1e-5, atol=1e-6), (out, ref)

    out_sum = jax.block_until_ready(huber_loss(pred, target, reduction="sum"))
    assert jnp.allclose(out_sum, _ref_huber(pred, target, 1.0, "sum"),
                        rtol=1e-5, atol=1e-5)

    out_none = jax.block_until_ready(huber_loss(pred, target, reduction="none"))
    assert out_none.shape == pred.shape and out_none.dtype == pred.dtype
    assert jnp.allclose(out_none, _ref_huber(pred, target, 1.0, "none"),
                        rtol=1e-5, atol=1e-6)

    # Unaligned tiny case: lane padding + output re-slice path.
    p_u = jax.random.normal(k3, (7, 19), dtype=jnp.float32)
    t_u = jax.random.normal(k4, (7, 19), dtype=jnp.float32)
    out_u = jax.block_until_ready(huber_loss(p_u, t_u, beta=0.5, reduction="mean"))
    assert jnp.allclose(out_u, _ref_huber(p_u, t_u, 0.5, "mean"),
                        rtol=1e-5, atol=1e-6)
    out_un = jax.block_until_ready(huber_loss(p_u, t_u, beta=0.5, reduction="none"))
    assert out_un.shape == p_u.shape
    assert jnp.allclose(out_un, _ref_huber(p_u, t_u, 0.5, "none"),
                        rtol=1e-5, atol=1e-6)

    # Partial-last-block case: exercises Pallas partial blocks + in-kernel
    # tail-row masking in the reduction kernel (rows=9, block_rows=8).
    p_p = jax.random.normal(k5, (9, 128), dtype=jnp.float32)
    t_p = jax.random.normal(k6, (9, 128), dtype=jnp.float32)
    out_p = jax.block_until_ready(huber_loss(p_p, t_p, reduction="sum"))
    assert jnp.allclose(out_p, _ref_huber(p_p, t_p, 1.0, "sum"),
                        rtol=1e-5, atol=1e-4)
    out_pn = jax.block_until_ready(huber_loss(p_p, t_p, reduction="none"))
    assert jnp.allclose(out_pn, _ref_huber(p_p, t_p, 1.0, "none"),
                        rtol=1e-5, atol=1e-6)

    print("KERNEL_OK")
</pallas_src>

<mosaic_0001>
module attributes {stable_mosaic.version = 11 : i64} {
  func.func @_partial_sum_kernel(%arg0: i32, %arg1: memref<16x128xf32, #tpu.memory_space<vmem>>, %arg2: memref<16x128xf32, #tpu.memory_space<vmem>>, %arg3: memref<8x128xf32, #tpu.memory_space<vmem>>) attributes {dimension_semantics = [#tpu.dimension_semantics<parallel>], iteration_bounds = array<i64: 1>, scalar_prefetch = 0 : i64, scratch_operands = 0 : i64, tpu.core_type = #tpu.core_type<tc>, window_params = [{transform_indices = @transform_0, window_bounds = array<i64: 16, 128>}, {transform_indices = @transform_1, window_bounds = array<i64: 16, 128>}, {transform_indices = @transform_2, window_bounds = array<i64: 8, 128>}]} {
    %c0 = arith.constant 0 : index
    %c0_0 = arith.constant 0 : index
    %0 = vector.load %arg1[%c0, %c0_0] : memref<16x128xf32, #tpu.memory_space<vmem>>, vector<16x128xf32>
    %c0_1 = arith.constant 0 : index
    %c0_2 = arith.constant 0 : index
    %1 = vector.load %arg2[%c0_1, %c0_2] : memref<16x128xf32, #tpu.memory_space<vmem>>, vector<16x128xf32>
    %2 = arith.subf %0, %1 : vector<16x128xf32>
    %3 = math.absf %2 : vector<16x128xf32>
    %cst = arith.constant 1.000000e+00 : f32
    %4 = vector.broadcast %cst : f32 to vector<16x128xf32>
    %5 = arith.cmpf olt, %3, %4 : vector<16x128xf32>
    %6 = arith.mulf %2, %2 : vector<16x128xf32>
    %cst_3 = arith.constant 5.000000e-01 : f32
    %7 = vector.broadcast %cst_3 : f32 to vector<16x128xf32>
    %8 = arith.mulf %6, %7 : vector<16x128xf32>
    %cst_4 = arith.constant 5.000000e-01 : f32
    %9 = vector.broadcast %cst_4 : f32 to vector<16x128xf32>
    %10 = arith.subf %3, %9 : vector<16x128xf32>
    %11 = arith.select %5, %8, %10 : vector<16x128xi1>, vector<16x128xf32>
    %12 = vector.shape_cast %11 : vector<16x128xf32> to vector<2x8x128xf32>
    %cst_5 = arith.constant dense<0.000000e+00> : vector<8x128xf32>
    %13 = vector.multi_reduction <add>, %12, %cst_5 [0] : vector<2x8x128xf32> to vector<8x128xf32>
    %c0_6 = arith.constant 0 : index
    %c0_7 = arith.constant 0 : index
    %14 = vector.load %arg3[%c0_6, %c0_7] : memref<8x128xf32, #tpu.memory_space<vmem>>, vector<8x128xf32>
    tpu.vector_store %arg3[%c0_6, %c0_7], %13 {strides = array<i32>} : memref<8x128xf32, #tpu.memory_space<vmem>>, vector<8x128xf32>,
    return
  }
  func.func @transform_0(%arg0: i32) -> (i32, i32) {
    %c0_i32 = arith.constant 0 : i32
    %c0_i32_0 = arith.constant 0 : i32
    return %arg0, %c0_i32 : i32, i32
  }
  func.func @transform_1(%arg0: i32) -> (i32, i32) {
    %c0_i32 = arith.constant 0 : i32
    %c0_i32_0 = arith.constant 0 : i32
    return %arg0, %c0_i32 : i32, i32
  }
  func.func @transform_2(%arg0: i32) -> (i32, i32) {
    %c0_i32 = arith.constant 0 : i32
    %c0_i32_0 = arith.constant 0 : i32
    return %arg0, %c0_i32 : i32, i32
  }
}

</mosaic_0001>

<llo_original>
// kernel: tpu_custom_call.1
$region0: #{tpu_custom_call.1}
  #allocation0 [shape = 'u32[]', space=smem, size = 0x4, offset = 0x4, fixed_abs, tag = 'smem constant byte address 0x4 - core index']
  #allocation1 [shape = 'u32[144,128]{1,0:T(1,128)}', space=vmem, size = 0x12000, scoped, tag = 'internal scratch']
  %s0 = inlined_call_operand.hbm [shape: f32[16,128], index: 0, kind: input, shape index: {}]
  %s1 = inlined_call_operand.hbm [shape: f32[16,128], index: 1, kind: input, shape index: {}]
  %s2 = inlined_call_operand.hbm [shape: f32[8,128], index: 2, kind: output, shape index: {}]
  %s3 = sld [smem:[#allocation0]]
  $region26: #{tpu_custom_call.1} parent=0
    _
  %s5 = ssub.s32 1, %s3
  %s6 = scalar_select 0, %s5, %s3
  $region1: #{tpu_custom_call.1} parent=0
    #allocation2 [shape = 'u8[8192]{0}', space=vmem, size = 0x2000, scoped, tag = 'input window, operand 0, single buffered']
    #allocation3 [shape = 's32[1]{0}', space=sflag, size = 0x4, scoped, tag = 'scoped memory for tpu_custom_call.1']
    #allocation4 [shape = 's32[1]{0}', space=sflag, size = 0x4, scoped, tag = 'scoped memory for tpu_custom_call.1']
    #allocation5 [shape = 'u8[8192]{0}', space=vmem, size = 0x2000, scoped, tag = 'input window, operand 1, single buffered']
    #allocation6 [shape = 's32[1]{0}', space=sflag, size = 0x4, scoped, tag = 'scoped memory for tpu_custom_call.1']
    #allocation7 [shape = 'u8[4096]{0}', space=vmem, size = 0x1000, scoped, tag = 'output window, operand 0, single buffered']
    %7 = vsyncpa [#allocation3], 0
    %8 = vsyncpa [#allocation6], 0
    %9 = vsyncpa [#allocation4], 0
    // Predicated region
    $region2: #{tpu_custom_call.1} parent=1 // pred_check
      _
    $region3: #{tpu_custom_call.1} parent=1 // pred_check_branch
      %11 = sbr.rel (0) target = $region5
    $region4: #{tpu_custom_call.1} parent=1 // pred_region
      %s13 = ssub.s32 256, 256
      %14 = vsyncadd [#allocation3], %s13
      %s15 = sshll.u32 [#allocation2], 4
      %s16 = int_to_ptr.vmem [resolvable:$true] %s15
      %21 = dma.hbm_to_vmem [thread:$0]  %s0, 256, %s16, [#allocation3], 128, 128, 8
    $region5: #{tpu_custom_call.1} parent=1 // pred_fallthru
      _
    // Predicated region
    $region6: #{tpu_custom_call.1} parent=1 // pred_check
      _
    $region7: #{tpu_custom_call.1} parent=1 // pred_check_branch
      %23 = sbr.rel (0) target = $region9
    $region8: #{tpu_custom_call.1} parent=1 // pred_region
      %s25 = ssub.s32 256, 256
      %26 = vsyncadd [#allocation6], %s25
      %s27 = sshll.u32 [#allocation5], 4
      %s28 = int_to_ptr.vmem [resolvable:$true] %s27
      %33 = dma.hbm_to_vmem [thread:$0]  %s1, 256, %s28, [#allocation6], 128, 128, 8
    $region9: #{tpu_custom_call.1} parent=1 // pred_fallthru
      _
    // Predicated region
    $region10: #{tpu_custom_call.1} parent=1 // pred_check
      _
    $region11: #{tpu_custom_call.1} parent=1 // pred_check_branch
      %35 = sbr.rel (0) target = $region13
    $region12: #{tpu_custom_call.1} parent=1 // pred_region
      %36 = dma.done [#allocation3], 256
    $region13: #{tpu_custom_call.1} parent=1 // pred_fallthru
      _
    // Predicated region
    $region14: #{tpu_custom_call.1} parent=1 // pred_check
      _
    $region15: #{tpu_custom_call.1} parent=1 // pred_check_branch
      %38 = sbr.rel (0) target = $region17
    $region16: #{tpu_custom_call.1} parent=1 // pred_region
      %39 = dma.done [#allocation6], 256
    $region17: #{tpu_custom_call.1} parent=1 // pred_fallthru
      _
    %v40 = vld [vmem:[#allocation2] sm:$0xff]
    %v41 = vld [vmem:[#allocation2 + $0x8] sm:$0xff]
    %v42 = vld [vmem:[#allocation5] sm:$0xff]
    %v43 = vld [vmem:[#allocation5 + $0x8] sm:$0xff]
    %v44 = vsub.f32 %v40, %v42
    %v45 = vsub.f32 %v41, %v43
    %v46 = vand.u32 2147483647, %v44
    %v47 = vand.u32 2147483647, %v45
    %vm48 = vcmp.lt.f32.partialorder %v46, 1.0
    %vm49 = vcmp.lt.f32.partialorder %v47, 1.0
    %v50 = vmul.f32 %v44, %v44
    %v51 = vmul.f32 %v45, %v45
    %v52 = vmul.f32 %v50, 0.5
    %v53 = vmul.f32 %v51, 0.5
    %v54 = vsub.f32 %v46, 0.5
    %v55 = vsub.f32 %v47, 0.5
    %v56 = vsel %vm48, %v52, %v54
    %v57 = vsel %vm49, %v53, %v55
    %v58 = vadd.f32 %v56, %v57
    %59 = vst [vmem:[#allocation7] sm:$0xff] %v58
    // Predicated region
    $region18: #{tpu_custom_call.1} parent=1 // pred_check
      _
    $region19: #{tpu_custom_call.1} parent=1 // pred_check_branch
      %61 = sbr.rel (0) target = $region21
    $region20: #{tpu_custom_call.1} parent=1 // pred_region
      %s63 = ssub.s32 128, 128
      %64 = vsyncadd [#allocation4], %s63
      %s66 = sshll.u32 [#allocation7], 4
      %s67 = int_to_ptr.vmem [resolvable:$true] %s66
      %69 = dma.vmem_to_hbm [thread:$0]  %s67, 128, %s2, [#allocation4]
    $region21: #{tpu_custom_call.1} parent=1 // pred_fallthru
      _
    // Predicated region
    $region22: #{tpu_custom_call.1} parent=1 // pred_check
      _
    $region23: #{tpu_custom_call.1} parent=1 // pred_check_branch
      %71 = sbr.rel (0) target = $region25
    $region24: #{tpu_custom_call.1} parent=1 // pred_region
      %72 = dma.done [#allocation4], 128
    $region25: #{tpu_custom_call.1} parent=1 // pred_fallthru
      _
    %73 = vsyncpa [#allocation3], 1
    %74 = vsyncpa [#allocation6], 1
    %75 = vsyncpa [#allocation4], 1

</llo_original>
